<compile_context>
chip_gen: v5e
topology: v5e:2x2
jax: 0.10.0
libtpu: 0.0.40
codegen_flags: <defaults>
</compile_context>

<pallas_src>
import functools

import jax
import jax.numpy as jnp
from jax import lax
from jax.experimental import pallas as pl
from jax.experimental.pallas import tpu as pltpu


def _centered_dft_matrix(n):
    """Matrix F with F @ x == fftshift(fft(ifftshift(x), norm='ortho'))."""
    eye = jnp.eye(n, dtype=jnp.complex64)
    return jnp.fft.fftshift(
        jnp.fft.fft(jnp.fft.ifftshift(eye, axes=0), axis=0, norm="ortho"), axes=0)


def _cplx_matmul(ar, ai, br, bi, mm_dtype):
    """Complex matmul on the MXU with f32 accumulation."""
    f32 = jnp.float32
    if mm_dtype == jnp.float32:
        # Gauss 3-multiply (25% fewer MXU flops); safe in f32.
        t1 = jnp.dot(ar, br, preferred_element_type=f32)
        t2 = jnp.dot(ai, bi, preferred_element_type=f32)
        t3 = jnp.dot(ar + ai, br + bi, preferred_element_type=f32)
        return t1 - t2, t3 - t1 - t2
    # bf16-operand path (v6e/v7x): plain 4-matmul form (Gauss cancellation is unsafe
    # at low precision), f32 accumulation.
    ar, ai, br, bi = (x.astype(mm_dtype) for x in (ar, ai, br, bi))
    rr = (jnp.dot(ar, br, preferred_element_type=f32)
          - jnp.dot(ai, bi, preferred_element_type=f32))
    ri = (jnp.dot(ar, bi, preferred_element_type=f32)
          + jnp.dot(ai, br, preferred_element_type=f32))
    return rr, ri


def _adjoint_op(kr, ki, sm_r, sm_i, fh_r, fhc_i, bw_r, bwc_i, C, TW, mm_dtype):
    """AH: pre-masked wide k-space [H, C*T*W] -> image [H, T*W] (fhc/bwc = conj imag)."""
    zr, zi = _cplx_matmul(kr, ki, bw_r, bwc_i, mm_dtype)     # W-side inverse FFT (blockdiag)
    ir, ii = _cplx_matmul(fh_r, fhc_i, zr, zi, mm_dtype)     # H-side inverse FFT
    cr = sm_r * ir + sm_i * ii                               # conj(smaps) * coil images
    ci = sm_r * ii - sm_i * ir
    ar, ai = cr[:, 0:TW], ci[:, 0:TW]
    for c in range(1, C):                                    # coil combine (lane blocks)
        ar = ar + cr[:, c * TW:(c + 1) * TW]
        ai = ai + ci[:, c * TW:(c + 1) * TW]
    return ar, ai


def _forward_op(pr, pi, sm_blocks, fh_r, fh_i, bw_r, bw_i, mm_dtype):
    """A (unmasked): image [H, T*W] -> wide multicoil k-space [H, C*T*W]."""
    # Per-coil products written straight into the wide slab (no p broadcast copies).
    cr = jnp.concatenate([br * pr - bi * pi for br, bi in sm_blocks], axis=1)
    ci = jnp.concatenate([br * pi + bi * pr for br, bi in sm_blocks], axis=1)
    gr, gi = _cplx_matmul(fh_r, fh_i, cr, ci, mm_dtype)      # H-side FFT
    return _cplx_matmul(gr, gi, bw_r, bw_i, mm_dtype)        # W-side FFT (blockdiag)


def _rhs_kernel(y_r_ref, y_i_ref, sm_r_ref, sm_i_ref,
                fh_r_ref, fh_i_ref, bw_r_ref, bw_i_ref,
                rhs_r_ref, rhs_i_ref, *, C, TW, lam, mm_dtype):
    """rhs = AH(y) + lam*img = (1+lam)*AH(y)   (y pre-masked on host, read once)."""
    fhc_i = -fh_i_ref[...]
    bwc_i = -bw_i_ref[...]
    xr, xi = _adjoint_op(y_r_ref[0], y_i_ref[0], sm_r_ref[0], sm_i_ref[0],
                         fh_r_ref[...], fhc_i, bw_r_ref[...], bwc_i, C, TW, mm_dtype)
    scale = jnp.float32(1.0 + lam)
    rhs_r_ref[0] = scale * xr
    rhs_i_ref[0] = scale * xi


def _cg_kernel(rhs_r_ref, rhs_i_ref, msq_ref, sm_r_ref, sm_i_ref,
               fh_r_ref, fh_i_ref, bw_r_ref, bw_i_ref,
               out_r_ref, out_i_ref, *, C, TW, lam, tol, max_iter, mm_dtype):
    f32 = jnp.float32

    # ---- loop-invariant operands (hoisted once, before the while_loop) ----
    fh_r, fh_i = fh_r_ref[...], fh_i_ref[...]
    bw_r, bw_i = bw_r_ref[...], bw_i_ref[...]
    fhc_i, bwc_i = -fh_i, -bw_i
    sm_r, sm_i = sm_r_ref[0], sm_i_ref[0]                    # wide [H, C*T*W]
    msq = msq_ref[0]                                         # wide mask^2 [H, C*T*W]
    rhs_r, rhs_i = rhs_r_ref[0], rhs_i_ref[0]                # [H, T*W]
    sm_blocks = [(sm_r[:, c * TW:(c + 1) * TW], sm_i[:, c * TW:(c + 1) * TW])
                 for c in range(C)]

    def normal_op(pr, pi):                                   # AH(mask*A(p)) + lam*p
        kr, ki = _forward_op(pr, pi, sm_blocks, fh_r, fh_i, bw_r, bw_i, mm_dtype)
        qr, qi = _adjoint_op(msq * kr, msq * ki, sm_r, sm_i,
                             fh_r, fhc_i, bw_r, bwc_i, C, TW, mm_dtype)
        return qr + lam * pr, qi + lam * pi

    zeros = jnp.zeros_like(rhs_r)
    rTr0 = jnp.sum(rhs_r * rhs_r + rhs_i * rhs_i)

    # ---- conjugate gradient with real early exit ----
    def cond_fn(carry):
        it, rTr = carry[0], carry[1]
        return jnp.logical_and(it < max_iter, rTr > tol)

    def body_fn(carry):
        it, rTr, xr, xi, rr, ri, pr, pi = carry
        qr, qi = normal_op(pr, pi)
        # AH A + lam I is Hermitian PSD -> <p, q> is real up to roundoff: real-alpha CG.
        dr = jnp.sum(pr * qr + pi * qi)
        alpha = rTr / jnp.maximum(dr, f32(1e-30))            # guard degenerate divide only
        xr = xr + alpha * pr
        xi = xi + alpha * pi
        rr = rr - alpha * qr
        ri = ri - alpha * qi
        rTr_new = jnp.sum(rr * rr + ri * ri)
        beta = rTr_new / rTr
        return (it + jnp.int32(1), rTr_new, xr, xi, rr, ri,
                rr + beta * pr, ri + beta * pi)

    carry0 = (jnp.int32(0), rTr0, zeros, zeros, rhs_r, rhs_i, rhs_r, rhs_i)
    carry = lax.while_loop(cond_fn, body_fn, carry0)

    out_r_ref[0] = carry[2]
    out_i_ref[0] = carry[3]


def _auto_vmem_limit_bytes(C, T, H, W):
    """Generation-aware scoped-VMEM limit; None keeps the compiler default."""
    CTW, TW = C * T * W, T * W
    fb = 4
    resident = (
        2 * (3 * H * CTW + 2 * H * TW) * fb      # double-buffered per-sample inputs
        + (2 * H * H + 2 * CTW * CTW) * fb       # DFT + block-diag constants
        + 12 * H * CTW * fb                      # matmul / elementwise temporaries
        + 10 * H * TW * fb)                      # CG state vectors
    if resident <= (16 << 20):                   # well under every default scoped limit
        return None
    try:
        cap = int(pltpu.get_tpu_info().vmem_capacity_bytes)
    except Exception:
        cap = 64 << 20                           # conservative (v7x per-core VMEM)
    return int(min(resident * 2, int(cap * 0.875)))


def recon_dcpm(kspace, mask, smaps, *, max_iter, weight_init=1e12, tol=1e-12,
               weight_scale=1.0, matmul_dtype=jnp.float32):
    """kspace/smaps: complex64 [B,C,T,H,W]; mask coil-independent, broadcastable to kspace.

    Reproduces ReconDCPM.forward(img=None, kspace, mask, smaps); returns complex [B,T,H,W].
    """
    B, C, T, H, W = kspace.shape
    CT, TW, CTW = C * T, T * W, C * T * W
    lam = float(1.0 / max(weight_init * weight_scale, 1e-9))

    # ---- host-side layout prep (no [B,C,T,H,W] mask materialization) ----
    # Coil-independent sampling mask [B,T,H,W] (raises loudly if a coil-dependent mask is given).
    mask_tw = jnp.broadcast_to(mask.astype(jnp.float32), (B, 1, T, H, W))[:, 0]
    y = kspace.astype(jnp.complex64) * mask_tw[:, None]               # masked exactly once
    y_w = jnp.transpose(y, (0, 3, 1, 2, 4)).reshape(B, H, CTW)        # wide [H, C*T*W]
    y_r = jnp.real(y_w).astype(jnp.float32)
    y_i = jnp.imag(y_w).astype(jnp.float32)
    sm = jnp.transpose(smaps.astype(jnp.complex64), (0, 3, 1, 2, 4)).reshape(B, H, CTW)
    sm_r = jnp.real(sm).astype(jnp.float32)
    sm_i = jnp.imag(sm).astype(jnp.float32)
    # mask^2 (A-mask then AH-mask), pre-broadcast over coils: one VPU multiply per iteration.
    msq = jnp.tile(jnp.transpose(mask_tw * mask_tw, (0, 2, 1, 3)).reshape(B, H, TW),
                   (1, 1, C))

    fh = _centered_dft_matrix(H)                                       # [H, H]
    bw = jnp.kron(jnp.eye(CT, dtype=jnp.complex64),
                  _centered_dft_matrix(W).T)                           # blockdiag_CT(FwT)
    fh_r = jnp.real(fh).astype(jnp.float32)
    fh_i = jnp.imag(fh).astype(jnp.float32)
    bw_r = jnp.real(bw).astype(jnp.float32)
    bw_i = jnp.imag(bw).astype(jnp.float32)

    # ---- specs shared by both pallas_calls ----
    per_sample_wide = pl.BlockSpec((1, H, CTW), lambda b: (b, 0, 0))
    per_sample_img = pl.BlockSpec((1, H, TW), lambda b: (b, 0, 0))
    const_specs = [
        pl.BlockSpec((H, H), lambda b: (0, 0)),        # Fh real
        pl.BlockSpec((H, H), lambda b: (0, 0)),        # Fh imag
        pl.BlockSpec((CTW, CTW), lambda b: (0, 0)),    # blockdiag(FwT) real
        pl.BlockSpec((CTW, CTW), lambda b: (0, 0)),    # blockdiag(FwT) imag
    ]
    cp_kwargs = dict(dimension_semantics=("parallel",))
    vlim = _auto_vmem_limit_bytes(C, T, H, W)
    if vlim is not None:
        cp_kwargs["vmem_limit_bytes"] = vlim
    cparams = pltpu.CompilerParams(**cp_kwargs)

    # ---- pass 1: rhs = (1+lam) * AH(y)  (y never enters the CG kernel's resident set) ----
    rhs_kernel = functools.partial(_rhs_kernel, C=C, TW=TW, lam=lam, mm_dtype=matmul_dtype)
    rhs_r, rhs_i = pl.pallas_call(
        rhs_kernel,
        out_shape=(jax.ShapeDtypeStruct((B, H, TW), jnp.float32),
                   jax.ShapeDtypeStruct((B, H, TW), jnp.float32)),
        grid_spec=pltpu.PrefetchScalarGridSpec(
            num_scalar_prefetch=0, grid=(B,),
            in_specs=[per_sample_wide, per_sample_wide,
                      per_sample_wide, per_sample_wide] + const_specs,
            out_specs=[per_sample_img, per_sample_img]),
        compiler_params=cparams,
    )(y_r, y_i, sm_r, sm_i, fh_r, fh_i, bw_r, bw_i)

    # ---- pass 2: CG solve of (AH A + lam I) x = rhs ----
    cg_kernel = functools.partial(_cg_kernel, C=C, TW=TW, lam=lam, tol=float(tol),
                                  max_iter=int(max_iter), mm_dtype=matmul_dtype)
    out_r, out_i = pl.pallas_call(
        cg_kernel,
        out_shape=(jax.ShapeDtypeStruct((B, H, TW), jnp.float32),
                   jax.ShapeDtypeStruct((B, H, TW), jnp.float32)),
        grid_spec=pltpu.PrefetchScalarGridSpec(
            num_scalar_prefetch=0, grid=(B,),
            in_specs=[per_sample_img, per_sample_img,
                      per_sample_wide, per_sample_wide, per_sample_wide] + const_specs,
            out_specs=[per_sample_img, per_sample_img]),
        compiler_params=cparams,
    )(rhs_r, rhs_i, msq, sm_r, sm_i, fh_r, fh_i, bw_r, bw_i)

    out = lax.complex(out_r, out_i)                        # [B, H, T*W]
    return out.reshape(B, H, T, W).transpose(0, 2, 1, 3)   # [B, T, H, W]


# ---------------- pure-JAX reference (sanity check only) ----------------
def _fft2c(x):
    return jnp.fft.fftshift(jnp.fft.fftn(jnp.fft.ifftshift(x, axes=(-2, -1)),
                                         axes=(-2, -1), norm="ortho"), axes=(-2, -1))


def _ifft2c(x):
    return jnp.fft.fftshift(jnp.fft.ifftn(jnp.fft.ifftshift(x, axes=(-2, -1)),
                                          axes=(-2, -1), norm="ortho"), axes=(-2, -1))


def _A_ref(img, mask, smaps):
    return _fft2c(jnp.expand_dims(img, -4) * smaps) * mask


def _AH_ref(ksp, mask, smaps):
    return jnp.sum(jnp.conj(smaps) * _ifft2c(ksp * mask), axis=-4)


def _recon_ref(kspace, mask, smaps, max_iter, weight_init=1e12, tol=1e-12):
    lam = 1.0 / max(weight_init, 1e-9)
    mask = jnp.broadcast_to(mask, kspace.shape)
    outs = []
    for n in range(kspace.shape[0]):
        y, m, s = kspace[n:n + 1], mask[n:n + 1], smaps[n:n + 1]
        x0 = _AH_ref(y, m, s)
        rhs = _AH_ref(y, m, s) + lam * x0
        M = lambda p: _AH_ref(_A_ref(p, m, s), m, s) + lam * p
        x = jnp.zeros_like(rhs)
        r = rhs
        p = rhs
        rTr = jnp.real(jnp.sum(jnp.conj(r) * r))
        for _ in range(max_iter):
            if float(rTr) <= tol:
                break
            q = M(p)
            alpha = rTr / jnp.sum(jnp.conj(p) * q)
            x = x + alpha * p
            r = r - alpha * q
            rTrNew = jnp.real(jnp.sum(jnp.conj(r) * r))
            beta = rTrNew / rTr
            p = r + beta * p
            rTr = rTrNew
        outs.append(x)
    return jnp.concatenate(outs, axis=0)


if __name__ == "__main__":
    B, C, T, H, W = 2, 4, 2, 16, 16
    MAX_ITER = 6

    key = jax.random.PRNGKey(0)
    k1, k2, k3, k4, k5 = jax.random.split(key, 5)
    kspace = (jax.random.normal(k1, (B, C, T, H, W), jnp.float32)
              + 1j * jax.random.normal(k2, (B, C, T, H, W), jnp.float32)).astype(jnp.complex64)
    smaps = (jax.random.normal(k3, (B, C, 1, H, W), jnp.float32)
             + 1j * jax.random.normal(k4, (B, C, 1, H, W), jnp.float32)).astype(jnp.complex64)
    smaps = smaps / jnp.sqrt(jnp.sum(jnp.abs(smaps) ** 2, axis=1, keepdims=True))
    smaps = jnp.broadcast_to(smaps, (B, C, T, H, W)).astype(jnp.complex64)
    mask = (jax.random.uniform(k5, (B, 1, T, H, W)) < 0.6).astype(jnp.float32)

    out = recon_dcpm(kspace, mask, smaps, max_iter=MAX_ITER,
                     weight_init=1e12, tol=1e-12)
    out = jax.block_until_ready(out)

    ref = _recon_ref(kspace, mask, smaps, max_iter=MAX_ITER,
                     weight_init=1e12, tol=1e-12)
    rel_err = float(jnp.max(jnp.abs(out - ref))) / (float(jnp.max(jnp.abs(ref))) + 1e-12)
    assert out.shape == (B, T, H, W) and bool(jnp.all(jnp.isfinite(out.real)))
    assert rel_err < 5e-2, f"kernel/ref mismatch: rel_err={rel_err}"
    print("KERNEL_OK")
</pallas_src>

<mosaic_0001>
module attributes {stable_mosaic.version = 11 : i64} {
  func.func @_rhs_kernel(%arg0: i32, %arg1: memref<1x16x128xf32, #tpu.memory_space<vmem>>, %arg2: memref<1x16x128xf32, #tpu.memory_space<vmem>>, %arg3: memref<1x16x128xf32, #tpu.memory_space<vmem>>, %arg4: memref<1x16x128xf32, #tpu.memory_space<vmem>>, %arg5: memref<16x16xf32, #tpu.memory_space<vmem>>, %arg6: memref<16x16xf32, #tpu.memory_space<vmem>>, %arg7: memref<128x128xf32, #tpu.memory_space<vmem>>, %arg8: memref<128x128xf32, #tpu.memory_space<vmem>>, %arg9: memref<1x16x32xf32, #tpu.memory_space<vmem>>, %arg10: memref<1x16x32xf32, #tpu.memory_space<vmem>>) attributes {dimension_semantics = [#tpu.dimension_semantics<parallel>], iteration_bounds = array<i64: 2>, scalar_prefetch = 0 : i64, scratch_operands = 0 : i64, tpu.core_type = #tpu.core_type<tc>, window_params = [{transform_indices = @transform_0, window_bounds = array<i64: 1, 16, 128>}, {transform_indices = @transform_1, window_bounds = array<i64: 1, 16, 128>}, {transform_indices = @transform_2, window_bounds = array<i64: 1, 16, 128>}, {transform_indices = @transform_3, window_bounds = array<i64: 1, 16, 128>}, {pipeline_mode = #tpu.pipeline_mode<synchronous>, transform_indices = @transform_4, window_bounds = array<i64: 16, 16>}, {pipeline_mode = #tpu.pipeline_mode<synchronous>, transform_indices = @transform_5, window_bounds = array<i64: 16, 16>}, {pipeline_mode = #tpu.pipeline_mode<synchronous>, transform_indices = @transform_6, window_bounds = array<i64: 128, 128>}, {pipeline_mode = #tpu.pipeline_mode<synchronous>, transform_indices = @transform_7, window_bounds = array<i64: 128, 128>}, {transform_indices = @transform_8, window_bounds = array<i64: 1, 16, 32>}, {transform_indices = @transform_9, window_bounds = array<i64: 1, 16, 32>}]} {
    %c0 = arith.constant 0 : index
    %c0_0 = arith.constant 0 : index
    %0 = vector.load %arg6[%c0, %c0_0] : memref<16x16xf32, #tpu.memory_space<vmem>>, vector<16x16xf32>
    %cst = arith.constant 0.000000e+00 : f32
    %1 = vector.broadcast %cst : f32 to vector<16x16xf32>
    %2 = arith.subf %1, %0 : vector<16x16xf32>
    %c0_1 = arith.constant 0 : index
    %c0_2 = arith.constant 0 : index
    %3 = vector.load %arg8[%c0_1, %c0_2] : memref<128x128xf32, #tpu.memory_space<vmem>>, vector<128x128xf32>
    %cst_3 = arith.constant 0.000000e+00 : f32
    %4 = vector.broadcast %cst_3 : f32 to vector<128x128xf32>
    %5 = arith.subf %4, %3 : vector<128x128xf32>
    %c0_4 = arith.constant 0 : index
    %c0_5 = arith.constant 0 : index
    %c0_6 = arith.constant 0 : index
    %6 = vector.load %arg1[%c0_4, %c0_5, %c0_6] : memref<1x16x128xf32, #tpu.memory_space<vmem>>, vector<1x16x128xf32>
    %7 = vector.shape_cast %6 : vector<1x16x128xf32> to vector<16x128xf32>
    %c0_7 = arith.constant 0 : index
    %c0_8 = arith.constant 0 : index
    %c0_9 = arith.constant 0 : index
    %8 = vector.load %arg2[%c0_7, %c0_8, %c0_9] : memref<1x16x128xf32, #tpu.memory_space<vmem>>, vector<1x16x128xf32>
    %9 = vector.shape_cast %8 : vector<1x16x128xf32> to vector<16x128xf32>
    %c0_10 = arith.constant 0 : index
    %c0_11 = arith.constant 0 : index
    %c0_12 = arith.constant 0 : index
    %10 = vector.load %arg3[%c0_10, %c0_11, %c0_12] : memref<1x16x128xf32, #tpu.memory_space<vmem>>, vector<1x16x128xf32>
    %11 = vector.shape_cast %10 : vector<1x16x128xf32> to vector<16x128xf32>
    %c0_13 = arith.constant 0 : index
    %c0_14 = arith.constant 0 : index
    %c0_15 = arith.constant 0 : index
    %12 = vector.load %arg4[%c0_13, %c0_14, %c0_15] : memref<1x16x128xf32, #tpu.memory_space<vmem>>, vector<1x16x128xf32>
    %13 = vector.shape_cast %12 : vector<1x16x128xf32> to vector<16x128xf32>
    %c0_16 = arith.constant 0 : index
    %c0_17 = arith.constant 0 : index
    %14 = vector.load %arg5[%c0_16, %c0_17] : memref<16x16xf32, #tpu.memory_space<vmem>>, vector<16x16xf32>
    %c0_18 = arith.constant 0 : index
    %c0_19 = arith.constant 0 : index
    %15 = vector.load %arg7[%c0_18, %c0_19] : memref<128x128xf32, #tpu.memory_space<vmem>>, vector<128x128xf32>
    %cst_20 = arith.constant dense<0.000000e+00> : vector<16x128xf32>
    %16 = tpu.matmul %7, %15, %cst_20 {dimension_numbers = #tpu.dot_dimension_numbers<[1], [0], [0], [1], [0, 0, 1, 1], [], []>} : vector<16x128xf32>, vector<128x128xf32>, vector<16x128xf32> -> vector<16x128xf32>
    %cst_21 = arith.constant dense<0.000000e+00> : vector<16x128xf32>
    %17 = tpu.matmul %9, %5, %cst_21 {dimension_numbers = #tpu.dot_dimension_numbers<[1], [0], [0], [1], [0, 0, 1, 1], [], []>} : vector<16x128xf32>, vector<128x128xf32>, vector<16x128xf32> -> vector<16x128xf32>
    %18 = arith.addf %7, %9 : vector<16x128xf32>
    %19 = arith.addf %15, %5 : vector<128x128xf32>
    %cst_22 = arith.constant dense<0.000000e+00> : vector<16x128xf32>
    %20 = tpu.matmul %18, %19, %cst_22 {dimension_numbers = #tpu.dot_dimension_numbers<[1], [0], [0], [1], [0, 0, 1, 1], [], []>} : vector<16x128xf32>, vector<128x128xf32>, vector<16x128xf32> -> vector<16x128xf32>
    %21 = arith.subf %16, %17 : vector<16x128xf32>
    %22 = arith.subf %20, %16 : vector<16x128xf32>
    %23 = arith.subf %22, %17 : vector<16x128xf32>
    %cst_23 = arith.constant dense<0.000000e+00> : vector<16x128xf32>
    %24 = tpu.matmul %14, %21, %cst_23 {dimension_numbers = #tpu.dot_dimension_numbers<[1], [0], [0], [1], [0, 0, 1, 1], [], []>} : vector<16x16xf32>, vector<16x128xf32>, vector<16x128xf32> -> vector<16x128xf32>
    %cst_24 = arith.constant dense<0.000000e+00> : vector<16x128xf32>
    %25 = tpu.matmul %2, %23, %cst_24 {dimension_numbers = #tpu.dot_dimension_numbers<[1], [0], [0], [1], [0, 0, 1, 1], [], []>} : vector<16x16xf32>, vector<16x128xf32>, vector<16x128xf32> -> vector<16x128xf32>
    %26 = arith.addf %14, %2 : vector<16x16xf32>
    %27 = arith.addf %21, %23 : vector<16x128xf32>
    %cst_25 = arith.constant dense<0.000000e+00> : vector<16x128xf32>
    %28 = tpu.matmul %26, %27, %cst_25 {dimension_numbers = #tpu.dot_dimension_numbers<[1], [0], [0], [1], [0, 0, 1, 1], [], []>} : vector<16x16xf32>, vector<16x128xf32>, vector<16x128xf32> -> vector<16x128xf32>
    %29 = arith.subf %24, %25 : vector<16x128xf32>
    %30 = arith.subf %28, %24 : vector<16x128xf32>
    %31 = arith.subf %30, %25 : vector<16x128xf32>
    %32 = arith.mulf %11, %29 : vector<16x128xf32>
    %33 = arith.mulf %13, %31 : vector<16x128xf32>
    %34 = arith.addf %32, %33 : vector<16x128xf32>
    %35 = arith.mulf %11, %31 : vector<16x128xf32>
    %36 = arith.mulf %13, %29 : vector<16x128xf32>
    %37 = arith.subf %35, %36 : vector<16x128xf32>
    %38 = vector.extract_strided_slice %34 {offsets = [0, 0], sizes = [16, 32], strides = [1, 1]} : vector<16x128xf32> to vector<16x32xf32>
    %39 = vector.extract_strided_slice %37 {offsets = [0, 0], sizes = [16, 32], strides = [1, 1]} : vector<16x128xf32> to vector<16x32xf32>
    %40 = vector.extract_strided_slice %34 {offsets = [0, 32], sizes = [16, 32], strides = [1, 1]} : vector<16x128xf32> to vector<16x32xf32>
    %41 = arith.addf %38, %40 : vector<16x32xf32>
    %42 = vector.extract_strided_slice %37 {offsets = [0, 32], sizes = [16, 32], strides = [1, 1]} : vector<16x128xf32> to vector<16x32xf32>
    %43 = arith.addf %39, %42 : vector<16x32xf32>
    %44 = vector.extract_strided_slice %34 {offsets = [0, 64], sizes = [16, 32], strides = [1, 1]} : vector<16x128xf32> to vector<16x32xf32>
    %45 = arith.addf %41, %44 : vector<16x32xf32>
    %46 = vector.extract_strided_slice %37 {offsets = [0, 64], sizes = [16, 32], strides = [1, 1]} : vector<16x128xf32> to vector<16x32xf32>
    %47 = arith.addf %43, %46 : vector<16x32xf32>
    %48 = vector.extract_strided_slice %34 {offsets = [0, 96], sizes = [16, 32], strides = [1, 1]} : vector<16x128xf32> to vector<16x32xf32>
    %49 = arith.addf %45, %48 : vector<16x32xf32>
    %50 = vector.extract_strided_slice %37 {offsets = [0, 96], sizes = [16, 32], strides = [1, 1]} : vector<16x128xf32> to vector<16x32xf32>
    %51 = arith.addf %47, %50 : vector<16x32xf32>
    %cst_26 = arith.constant 1.000000e+00 : f32
    %52 = vector.broadcast %cst_26 : f32 to vector<16x32xf32>
    %53 = arith.mulf %52, %49 : vector<16x32xf32>
    %c0_27 = arith.constant 0 : index
    %c0_28 = arith.constant 0 : index
    %c0_29 = arith.constant 0 : index
    %54 = vector.load %arg9[%c0_27, %c0_28, %c0_29] : memref<1x16x32xf32, #tpu.memory_space<vmem>>, vector<1x16x32xf32>
    %55 = vector.shape_cast %54 : vector<1x16x32xf32> to vector<16x32xf32>
    %56 = vector.shape_cast %53 : vector<16x32xf32> to vector<1x16x32xf32>
    tpu.vector_store %arg9[%c0_27, %c0_28, %c0_29], %56 {strides = array<i32>} : memref<1x16x32xf32, #tpu.memory_space<vmem>>, vector<1x16x32xf32>,
    %cst_30 = arith.constant 1.000000e+00 : f32
    %57 = vector.broadcast %cst_30 : f32 to vector<16x32xf32>
    %58 = arith.mulf %57, %51 : vector<16x32xf32>
    %c0_31 = arith.constant 0 : index
    %c0_32 = arith.constant 0 : index
    %c0_33 = arith.constant 0 : index
    %59 = vector.load %arg10[%c0_31, %c0_32, %c0_33] : memref<1x16x32xf32, #tpu.memory_space<vmem>>, vector<1x16x32xf32>
    %60 = vector.shape_cast %59 : vector<1x16x32xf32> to vector<16x32xf32>
    %61 = vector.shape_cast %58 : vector<16x32xf32> to vector<1x16x32xf32>
    tpu.vector_store %arg10[%c0_31, %c0_32, %c0_33], %61 {strides = array<i32>} : memref<1x16x32xf32, #tpu.memory_space<vmem>>, vector<1x16x32xf32>,
    return
  }
  func.func @transform_0(%arg0: i32) -> (i32, i32, i32) {
    %c0_i32 = arith.constant 0 : i32
    %c0_i32_0 = arith.constant 0 : i32
    %c0_i32_1 = arith.constant 0 : i32
    return %arg0, %c0_i32, %c0_i32_0 : i32, i32, i32
  }
  func.func @transform_1(%arg0: i32) -> (i32, i32, i32) {
    %c0_i32 = arith.constant 0 : i32
    %c0_i32_0 = arith.constant 0 : i32
    %c0_i32_1 = arith.constant 0 : i32
    return %arg0, %c0_i32, %c0_i32_0 : i32, i32, i32
  }
  func.func @transform_2(%arg0: i32) -> (i32, i32, i32) {
    %c0_i32 = arith.constant 0 : i32
    %c0_i32_0 = arith.constant 0 : i32
    %c0_i32_1 = arith.constant 0 : i32
    return %arg0, %c0_i32, %c0_i32_0 : i32, i32, i32
  }
  func.func @transform_3(%arg0: i32) -> (i32, i32, i32) {
    %c0_i32 = arith.constant 0 : i32
    %c0_i32_0 = arith.constant 0 : i32
    %c0_i32_1 = arith.constant 0 : i32
    return %arg0, %c0_i32, %c0_i32_0 : i32, i32, i32
  }
  func.func @transform_4(%arg0: i32) -> (i32, i32) {
    %c0_i32 = arith.constant 0 : i32
    %c0_i32_0 = arith.constant 0 : i32
    %c0_i32_1 = arith.constant 0 : i32
    return %c0_i32, %c0_i32_0 : i32, i32
  }
  func.func @transform_5(%arg0: i32) -> (i32, i32) {
    %c0_i32 = arith.constant 0 : i32
    %c0_i32_0 = arith.constant 0 : i32
    %c0_i32_1 = arith.constant 0 : i32
    return %c0_i32, %c0_i32_0 : i32, i32
  }
  func.func @transform_6(%arg0: i32) -> (i32, i32) {
    %c0_i32 = arith.constant 0 : i32
    %c0_i32_0 = arith.constant 0 : i32
    %c0_i32_1 = arith.constant 0 : i32
    return %c0_i32, %c0_i32_0 : i32, i32
  }
  func.func @transform_7(%arg0: i32) -> (i32, i32) {
    %c0_i32 = arith.constant 0 : i32
    %c0_i32_0 = arith.constant 0 : i32
    %c0_i32_1 = arith.constant 0 : i32
    return %c0_i32, %c0_i32_0 : i32, i32
  }
  func.func @transform_8(%arg0: i32) -> (i32, i32, i32) {
    %c0_i32 = arith.constant 0 : i32
    %c0_i32_0 = arith.constant 0 : i32
    %c0_i32_1 = arith.constant 0 : i32
    return %arg0, %c0_i32, %c0_i32_0 : i32, i32, i32
  }
  func.func @transform_9(%arg0: i32) -> (i32, i32, i32) {
    %c0_i32 = arith.constant 0 : i32
    %c0_i32_0 = arith.constant 0 : i32
    %c0_i32_1 = arith.constant 0 : i32
    return %arg0, %c0_i32, %c0_i32_0 : i32, i32, i32
  }
}

</mosaic_0001>

<llo_original>
// kernel: tpu_custom_call.1
$region0: #{tpu_custom_call.1}
  #allocation0 [shape = 'u32[]', space=smem, size = 0x4, offset = 0x4, fixed_abs, tag = 'smem constant byte address 0x4 - core index']
  #allocation1 [shape = 'u32[72,128]{1,0:T(1,128)}', space=vmem, size = 0x9000, scoped, tag = 'internal scratch']
  %s0 = inlined_call_operand.hbm [shape: f32[2,16,128], index: 0, kind: input, shape index: {}]
  %s1 = inlined_call_operand.hbm [shape: f32[2,16,128], index: 1, kind: input, shape index: {}]
  %s2 = inlined_call_operand.hbm [shape: f32[2,16,128], index: 2, kind: input, shape index: {}]
  %s3 = inlined_call_operand.hbm [shape: f32[2,16,128], index: 3, kind: input, shape index: {}]
  %s4 = inlined_call_operand.hbm [shape: f32[16,16], index: 4, kind: input, shape index: {}]
  %s5 = inlined_call_operand.hbm [shape: f32[16,16], index: 5, kind: input, shape index: {}]
  %s6 = inlined_call_operand.hbm [shape: f32[128,128], index: 6, kind: input, shape index: {}]
  %s7 = inlined_call_operand.hbm [shape: f32[128,128], index: 7, kind: input, shape index: {}]
  %s8 = inlined_call_operand.hbm [shape: f32[2,16,32], index: 8, kind: output, shape index: {0}]
  %s9 = inlined_call_operand.hbm [shape: f32[2,16,32], index: 9, kind: output, shape index: {1}]
  %10 = xla_tuple %s8, %s9
  %s11 = sld [smem:[#allocation0]]
  $region105: #{tpu_custom_call.1} parent=0
    _
  %s13 = ssub.s32 1, %s11
  %s14 = scalar_select 0, %s13, %s11
  $region1: #{tpu_custom_call.1} parent=0
    #allocation2 [shape = 'u8[16384]{0}', space=vmem, size = 0x4000, scoped, tag = 'input window, operand 0']
    #allocation3 [shape = 's32[2]{0}', space=sflag, size = 0x8, scoped, tag = 'scoped memory for tpu_custom_call.1']
    #allocation4 [shape = 's32[2]{0}', space=sflag, size = 0x8, scoped, tag = 'scoped memory for tpu_custom_call.1']
    #allocation5 [shape = 'u8[16384]{0}', space=vmem, size = 0x4000, scoped, tag = 'input window, operand 1']
    #allocation6 [shape = 's32[2]{0}', space=sflag, size = 0x8, scoped, tag = 'scoped memory for tpu_custom_call.1']
    #allocation7 [shape = 'u8[16384]{0}', space=vmem, size = 0x4000, scoped, tag = 'input window, operand 2']
    #allocation8 [shape = 'u8[16384]{0}', space=vmem, size = 0x4000, scoped, tag = 'input window, operand 3']
    #allocation9 [shape = 's32[2]{0}', space=sflag, size = 0x8, scoped, tag = 'scoped memory for tpu_custom_call.1']
    #allocation10 [shape = 'u8[8192]{0}', space=vmem, size = 0x2000, scoped, tag = 'input window, operand 4, single buffered']
    #allocation11 [shape = 'u8[8192]{0}', space=vmem, size = 0x2000, scoped, tag = 'input window, operand 5, single buffered']
    #allocation12 [shape = 's32[1]{0}', space=sflag, size = 0x4, scoped, tag = 'scoped memory for tpu_custom_call.1']
    #allocation13 [shape = 'u8[65536]{0}', space=vmem, size = 0x10000, scoped, tag = 'input window, operand 6, single buffered']
    #allocation14 [shape = 'u8[65536]{0}', space=vmem, size = 0x10000, scoped, tag = 'input window, operand 7, single buffered']
    #allocation15 [shape = 's32[1]{0}', space=sflag, size = 0x4, scoped, tag = 'scoped memory for tpu_custom_call.1']
    #allocation16 [shape = 'u8[16384]{0}', space=vmem, size = 0x4000, scoped, tag = 'output window, operand 0']
    #allocation17 [shape = 'u8[16384]{0}', space=vmem, size = 0x4000, scoped, tag = 'output window, operand 1']
    #allocation18 [shape = 's32[2]{0}', space=sflag, size = 0x8, scoped, tag = 'scoped memory for tpu_custom_call.1']
    %15 = vsyncpa [#allocation3], 0
    %s16 = scalar_lea.sflag [#allocation3], 1
    %17 = vsyncpa %s16, 0
    %18 = vsyncpa [#allocation6], 0
    %s19 = scalar_lea.sflag [#allocation6], 1
    %20 = vsyncpa %s19, 0
    %21 = vsyncpa [#allocation9], 0
    %s22 = scalar_lea.sflag [#allocation9], 1
    %23 = vsyncpa %s22, 0
    %24 = vsyncpa [#allocation12], 0
    %25 = vsyncpa [#allocation15], 0
    %26 = vsyncpa [#allocation4], 0
    %s27 = scalar_lea.sflag [#allocation4], 1
    %28 = vsyncpa %s27, 0
    %29 = vsyncpa [#allocation18], 0
    %s30 = scalar_lea.sflag [#allocation18], 1
    %31 = vsyncpa %s30, 0
    loop: start=0, step=1, limit=4
    $region2: #{tpu_custom_call.1} parent=1 // loop_pre_header
      _
    $region3: #{tpu_custom_call.1} parent=1 // loop_header
      %s33 = sphi 0, %s37
      %p34 = scmp.ge.s32.totalorder %s33, 4
      %s43 = sphi 0, %s45
      %s46 = sphi 0, %s43
      %s47 = sphi 0, %s46
      %s63 = sphi 0, %s47
      %s69 = sphi 0, %s71
      %s72 = sphi 0, %s69
      %s73 = sphi 0, %s72
      %s89 = sphi 0, %s73
      %s95 = sphi 0, %s97
      %s98 = sphi 0, %s95
      %s99 = sphi 0, %s98
      %s115 = sphi 0, %s99
      %s121 = sphi 0, %s123
      %s124 = sphi 0, %s121
      %s125 = sphi 0, %s124
      %s141 = sphi 0, %s125
      %s145 = sphi 0, %s145
      %s147 = sphi 0, %s145
      %s148 = sphi 0, %s147
      %s162 = sphi 0, %s148
      %s166 = sphi 0, %s166
      %s168 = sphi 0, %s166
      %s169 = sphi 0, %s168
      %s183 = sphi 0, %s169
      %s187 = sphi 0, %s187
      %s189 = sphi 0, %s187
      %s190 = sphi 0, %s189
      %s204 = sphi 0, %s190
      %s208 = sphi 0, %s208
      %s210 = sphi 0, %s208
      %s211 = sphi 0, %s210
      %s225 = sphi 0, %s211
      %s231 = sphi 0, %s233
      %s234 = sphi 0, %s231
      %s235 = sphi 0, %s234
      %s251 = sphi 0, %s235
      %s257 = sphi 0, %s259
      %s260 = sphi 0, %s257
      %s261 = sphi 0, %s260
      %s277 = sphi 0, %s261
    $region4: #{tpu_custom_call.1} parent=1 // loop_header_branch
      %36 = sbr.rel (%p34) target = $region8
    $region5: #{tpu_custom_call.1} parent=1 // loop_body
      %s38 = ssub.s32 %s33, 1
      %s39 = ssub.s32 %s33, 2
      %s40 = sadd.s32 %s33, 1
      %s41 = ssub.s32 %s33, %s40
      %p42 = scmp.eq.s32.totalorder %s41, 0
      %s44 = sadd.s32 %s43, 1
      %s45 = scalar_select %p42, %s43, %s44
      %p48 = pneg %p42
      %p49 = scmp.eq.s32.totalorder %s33, 1
      %p50 = por %p48, %p49
      %p51 = scmp.ne.s32.totalorder %s43, %s46
      %p52 = scmp.eq.s32.totalorder %s33, 0
      %p53 = por %p51, %p52
      %p54 = scmp.ne.s32.totalorder %s43, %s46
      %p55 = scmp.eq.s32.totalorder %s38, 1
      %p56 = por %p54, %p55
      %p57 = scmp.ne.s32.totalorder %s46, %s47
      %p58 = scmp.eq.s32.totalorder %s38, 0
      %p59 = por %p57, %p58
      %p60 = scmp.ne.s32.totalorder %s46, %s47
      %p61 = scmp.eq.s32.totalorder %s39, 1
      %p62 = por %p60, %p61
      %p64 = scmp.ne.s32.totalorder %s47, %s63
      %p65 = scmp.eq.s32.totalorder %s39, 0
      %p66 = por %p64, %p65
      %s67 = ssub.s32 %s33, %s40
      %p68 = scmp.eq.s32.totalorder %s67, 0
      %s70 = sadd.s32 %s69, 1
      %s71 = scalar_select %p68, %s69, %s70
      %p74 = pneg %p68
      %p75 = scmp.eq.s32.totalorder %s33, 1
      %p76 = por %p74, %p75
      %p77 = scmp.ne.s32.totalorder %s69, %s72
      %p78 = scmp.eq.s32.totalorder %s33, 0
      %p79 = por %p77, %p78
      %p80 = scmp.ne.s32.totalorder %s69, %s72
      %p81 = scmp.eq.s32.totalorder %s38, 1
      %p82 = por %p80, %p81
      %p83 = scmp.ne.s32.totalorder %s72, %s73
      %p84 = scmp.eq.s32.totalorder %s38, 0
      %p85 = por %p83, %p84
      %p86 = scmp.ne.s32.totalorder %s72, %s73
      %p87 = scmp.eq.s32.totalorder %s39, 1
      %p88 = por %p86, %p87
      %p90 = scmp.ne.s32.totalorder %s73, %s89
      %p91 = scmp.eq.s32.totalorder %s39, 0
      %p92 = por %p90, %p91
      %s93 = ssub.s32 %s33, %s40
      %p94 = scmp.eq.s32.totalorder %s93, 0
      %s96 = sadd.s32 %s95, 1
      %s97 = scalar_select %p94, %s95, %s96
      %p100 = pneg %p94
      %p101 = scmp.eq.s32.totalorder %s33, 1
      %p102 = por %p100, %p101
      %p103 = scmp.ne.s32.totalorder %s95, %s98
      %p104 = scmp.eq.s32.totalorder %s33, 0
      %p105 = por %p103, %p104
      %p106 = scmp.ne.s32.totalorder %s95, %s98
      %p107 = scmp.eq.s32.totalorder %s38, 1
      %p108 = por %p106, %p107
      %p109 = scmp.ne.s32.totalorder %s98, %s99
      %p110 = scmp.eq.s32.totalorder %s38, 0
      %p111 = por %p109, %p110
      %p112 = scmp.ne.s32.totalorder %s98, %s99
      %p113 = scmp.eq.s32.totalorder %s39, 1
      %p114 = por %p112, %p113
      %p116 = scmp.ne.s32.totalorder %s99, %s115
      %p117 = scmp.eq.s32.totalorder %s39, 0
      %p118 = por %p116, %p117
      %s119 = ssub.s32 %s33, %s40
      %p120 = scmp.eq.s32.totalorder %s119, 0
      %s122 = sadd.s32 %s121, 1
      %s123 = scalar_select %p120, %s121, %s122
      %p126 = pneg %p120
      %p127 = scmp.eq.s32.totalorder %s33, 1
      %p128 = por %p126, %p127
      %p129 = scmp.ne.s32.totalorder %s121, %s124
      %p130 = scmp.eq.s32.totalorder %s33, 0
      %p131 = por %p129, %p130
      %p132 = scmp.ne.s32.totalorder %s121, %s124
      %p133 = scmp.eq.s32.totalorder %s38, 1
      %p134 = por %p132, %p133
      %p135 = scmp.ne.s32.totalorder %s124, %s125
      %p136 = scmp.eq.s32.totalorder %s38, 0
      %p137 = por %p135, %p136
      %p138 = scmp.ne.s32.totalorder %s124, %s125
      %p139 = scmp.eq.s32.totalorder %s39, 1
      %p140 = por %p138, %p139
      %p142 = scmp.ne.s32.totalorder %s125, %s141
      %p143 = scmp.eq.s32.totalorder %s39, 0
      %p144 = por %p142, %p143
      %s146 = sadd.s32 %s145, 1
      %p149 = scmp.eq.s32.totalorder %s33, 1
      %p150 = scmp.ne.s32.totalorder %s145, %s147
      %p151 = scmp.eq.s32.totalorder %s33, 0
      %p152 = por %p150, %p151
      %p153 = scmp.ne.s32.totalorder %s145, %s147
      %p154 = scmp.eq.s32.totalorder %s38, 1
      %p155 = por %p153, %p154
      %p156 = scmp.ne.s32.totalorder %s147, %s148
      %p157 = scmp.eq.s32.totalorder %s38, 0
      %p158 = por %p156, %p157
      %p159 = scmp.ne.s32.totalorder %s147, %s148
      %p160 = scmp.eq.s32.totalorder %s39, 1
      %p161 = por %p159, %p160
      %p163 = scmp.ne.s32.totalorder %s148, %s162
      %p164 = scmp.eq.s32.totalorder %s39, 0
      %p165 = por %p163, %p164
      %s167 = sadd.s32 %s166, 1
      %p170 = scmp.eq.s32.totalorder %s33, 1
      %p171 = scmp.ne.s32.totalorder %s166, %s168
      %p172 = scmp.eq.s32.totalorder %s33, 0
      %p173 = por %p171, %p172
      %p174 = scmp.ne.s32.totalorder %s166, %s168
      %p175 = scmp.eq.s32.totalorder %s38, 1
      %p176 = por %p174, %p175
      %p177 = scmp.ne.s32.totalorder %s168, %s169
      %p178 = scmp.eq.s32.totalorder %s38, 0
      %p179 = por %p177, %p178
      %p180 = scmp.ne.s32.totalorder %s168, %s169
      %p181 = scmp.eq.s32.totalorder %s39, 1
      %p182 = por %p180, %p181
      %p184 = scmp.ne.s32.totalorder %s169, %s183
      %p185 = scmp.eq.s32.totalorder %s39, 0
      %p186 = por %p184, %p185
      %s188 = sadd.s32 %s187, 1
      %p191 = scmp.eq.s32.totalorder %s33, 1
      %p192 = scmp.ne.s32.totalorder %s187, %s189
      %p193 = scmp.eq.s32.totalorder %s33, 0
      %p194 = por %p192, %p193
      %p195 = scmp.ne.s32.totalorder %s187, %s189
      %p196 = scmp.eq.s32.totalorder %s38, 1
      %p197 = por %p195, %p196
      %p198 = scmp.ne.s32.totalorder %s189, %s190
      %p199 = scmp.eq.s32.totalorder %s38, 0
      %p200 = por %p198, %p199
      %p201 = scmp.ne.s32.totalorder %s189, %s190
      %p202 = scmp.eq.s32.totalorder %s39, 1
      %p203 = por %p201, %p202
      %p205 = scmp.ne.s32.totalorder %s190, %s204
      %p206 = scmp.eq.s32.totalorder %s39, 0
      %p207 = por %p205, %p206
      %s209 = sadd.s32 %s208, 1
      %p212 = scmp.eq.s32.totalorder %s33, 1
      %p213 = scmp.ne.s32.totalorder %s208, %s210
      %p214 = scmp.eq.s32.totalorder %s33, 0
      %p215 = por %p213, %p214
      %p216 = scmp.ne.s32.totalorder %s208, %s210
      %p217 = scmp.eq.s32.totalorder %s38, 1
      %p218 = por %p216, %p217
      %p219 = scmp.ne.s32.totalorder %s210, %s211
      %p220 = scmp.eq.s32.totalorder %s38, 0
      %p221 = por %p219, %p220
      %p222 = scmp.ne.s32.totalorder %s210, %s211
      %p223 = scmp.eq.s32.totalorder %s39, 1
      %p224 = por %p222, %p223
      %p226 = scmp.ne.s32.totalorder %s211, %s225
      %p227 = scmp.eq.s32.totalorder %s39, 0
      %p228 = por %p226, %p227
      %s229 = ssub.s32 %s33, %s40
      %p230 = scmp.eq.s32.totalorder %s229, 0
      %s232 = sadd.s32 %s231, 1
      %s233 = scalar_select %p230, %s231, %s232
      %p236 = pneg %p230
      %p237 = scmp.eq.s32.totalorder %s33, 1
      %p238 = por %p236, %p237
      %p239 = scmp.ne.s32.totalorder %s231, %s234
      %p240 = scmp.eq.s32.totalorder %s33, 0
      %p241 = por %p239, %p240
      %p242 = scmp.ne.s32.totalorder %s231, %s234
      %p243 = scmp.eq.s32.totalorder %s38, 1
      %p244 = por %p242, %p243
      %p245 = scmp.ne.s32.totalorder %s234, %s235
      %p246 = scmp.eq.s32.totalorder %s38, 0
      %p247 = por %p245, %p246
      %p248 = scmp.ne.s32.totalorder %s234, %s235
      %p249 = scmp.eq.s32.totalorder %s39, 1
      %p250 = por %p248, %p249
      %p252 = scmp.ne.s32.totalorder %s235, %s251
      %p253 = scmp.eq.s32.totalorder %s39, 0
      %p254 = por %p252, %p253
      %s255 = ssub.s32 %s33, %s40
      %p256 = scmp.eq.s32.totalorder %s255, 0
      %s258 = sadd.s32 %s257, 1
      %s259 = scalar_select %p256, %s257, %s258
      %p262 = pneg %p256
      %p263 = scmp.eq.s32.totalorder %s33, 1
      %p264 = por %p262, %p263
      %p265 = scmp.ne.s32.totalorder %s257, %s260
      %p266 = scmp.eq.s32.totalorder %s33, 0
      %p267 = por %p265, %p266
      %p268 = scmp.ne.s32.totalorder %s257, %s260
      %p269 = scmp.eq.s32.totalorder %s38, 1
      %p270 = por %p268, %p269
      %p271 = scmp.ne.s32.totalorder %s260, %s261
      %p272 = scmp.eq.s32.totalorder %s38, 0
      %p273 = por %p271, %p272
      %p274 = scmp.ne.s32.totalorder %s260, %s261
      %p275 = scmp.eq.s32.totalorder %s39, 1
      %p276 = por %p274, %p275
      %p278 = scmp.ne.s32.totalorder %s261, %s277
      %p279 = scmp.eq.s32.totalorder %s39, 0
      %p280 = por %p278, %p279
      %p281 = scmp.le.s32.totalorder 1, %s33
      %p282 = scmp.lt.s32.totalorder %s33, 3
      %p283 = pnand %p281, %p282
      %p284 = pneg %p283
      // Predicated region
      $region9: #{tpu_custom_call.1} parent=5 // pred_check
        _
      $region10: #{tpu_custom_call.1} parent=5 // pred_check_branch
        %286 = sbr.rel (%p283) target = $region12
      $region11: #{tpu_custom_call.1} parent=5 // pred_region
        %s287 = ssub.s32 %s33, 1
        // Predicated region
        $region13: #{tpu_custom_call.1} parent=11 // pred_check
          %p288 = pneg %p158
        $region14: #{tpu_custom_call.1} parent=11 // pred_check_branch
          %290 = sbr.rel (%p288) target = $region16
        $region15: #{tpu_custom_call.1} parent=11 // pred_region
          %292 = vsyncadd [#allocation9], 0
          %s293 = sshll.u32 %s4, 4
          %s294 = int_to_ptr.hbm [resolvable:$true] %s293
          %s295 = sshll.u32 [#allocation10], 4
          %s296 = int_to_ptr.vmem [resolvable:$true] %s295
          %301 = dma.hbm_to_vmem [thread:$0]  %s294, 256, %s296, [#allocation9], 128, 128, 8
        $region16: #{tpu_custom_call.1} parent=11 // pred_fallthru
          _
        // Predicated region
        $region17: #{tpu_custom_call.1} parent=11 // pred_check
          %p302 = pneg %p179
        $region18: #{tpu_custom_call.1} parent=11 // pred_check_branch
          %304 = sbr.rel (%p302) target = $region20
        $region19: #{tpu_custom_call.1} parent=11 // pred_region
          %306 = vsyncadd [#allocation12], 0
          %s307 = sshll.u32 %s5, 4
          %s308 = int_to_ptr.hbm [resolvable:$true] %s307
          %s309 = sshll.u32 [#allocation11], 4
          %s310 = int_to_ptr.vmem [resolvable:$true] %s309
          %315 = dma.hbm_to_vmem [thread:$0]  %s308, 256, %s310, [#allocation12], 128, 128, 8
        $region20: #{tpu_custom_call.1} parent=11 // pred_fallthru
          _
        // Predicated region
        $region21: #{tpu_custom_call.1} parent=11 // pred_check
          %p316 = pneg %p200
        $region22: #{tpu_custom_call.1} parent=11 // pred_check_branch
          %318 = sbr.rel (%p316) target = $region24
        $region23: #{tpu_custom_call.1} parent=11 // pred_region
          %320 = vsyncadd [#allocation12], 0
          %s321 = sshll.u32 %s6, 4
          %s322 = int_to_ptr.hbm [resolvable:$true] %s321
          %s323 = sshll.u32 [#allocation13], 4
          %s324 = int_to_ptr.vmem [resolvable:$true] %s323
          %329 = dma.hbm_to_vmem [thread:$0]  %s322, 2048, %s324, [#allocation12], 128, 128, 8
        $region24: #{tpu_custom_call.1} parent=11 // pred_fallthru
          _
        // Predicated region
        $region25: #{tpu_custom_call.1} parent=11 // pred_check
          %p330 = pneg %p221
        $region26: #{tpu_custom_call.1} parent=11 // pred_check_branch
          %332 = sbr.rel (%p330) target = $region28
        $region27: #{tpu_custom_call.1} parent=11 // pred_region
          %334 = vsyncadd [#allocation15], 0
          %s335 = sshll.u32 %s7, 4
          %s336 = int_to_ptr.hbm [resolvable:$true] %s335
          %s337 = sshll.u32 [#allocation14], 4
          %s338 = int_to_ptr.vmem [resolvable:$true] %s337
          %343 = dma.hbm_to_vmem [thread:$0]  %s336, 2048, %s338, [#allocation15], 128, 128, 8
        $region28: #{tpu_custom_call.1} parent=11 // pred_fallthru
          _
      $region12: #{tpu_custom_call.1} parent=5 // pred_fallthru
        _
      %p344 = scmp.lt.s32.totalorder %s33, 2
      // Predicated region
      $region29: #{tpu_custom_call.1} parent=5 // pred_check
        %p345 = pneg %p344
      $region30: #{tpu_custom_call.1} parent=5 // pred_check_branch
        %347 = sbr.rel (%p345) target = $region32
      $region31: #{tpu_custom_call.1} parent=5 // pred_region
        // Predicated region
        $region33: #{tpu_custom_call.1} parent=31 // pred_check
          %p348 = pneg %p53
        $region34: #{tpu_custom_call.1} parent=31 // pred_check_branch
          %350 = sbr.rel (%p348) target = $region36
        $region35: #{tpu_custom_call.1} parent=31 // pred_region
          %s351 = sand.u32 %s43, 1
          %s352 = scalar_lea.sflag [#allocation3], %s351
          %s353 = sand.u32 %s43, 1
          %s354 = smul.addr %s353, 16
          %s355 = scalar_lea.vmem [#allocation2], %s354
          %357 = vsyncadd %s352, 0
          %s358 = smul.addr %s33, 2
          %s359 = smul.addr %s358, 8
          %s360 = scalar_lea.hbm %s0, %s359
          %s361 = sshll.u32 %s360, 4
          %s362 = int_to_ptr.hbm [resolvable:$true] %s361
          %s363 = sshll.u32 %s355, 4
          %s364 = int_to_ptr.vmem [resolvable:$true] %s363
          %369 = dma.hbm_to_vmem [thread:$0]  %s362, 256, %s364, %s352, 128, 128, 8
        $region36: #{tpu_custom_call.1} parent=31 // pred_fallthru
          _
        // Predicated region
        $region37: #{tpu_custom_call.1} parent=31 // pred_check
          %p370 = pneg %p79
        $region38: #{tpu_custom_call.1} parent=31 // pred_check_branch
          %372 = sbr.rel (%p370) target = $region40
        $region39: #{tpu_custom_call.1} parent=31 // pred_region
          %s373 = sand.u32 %s33, 1
          %s374 = scalar_lea.sflag [#allocation6], %s373
          %s375 = sand.u32 %s69, 1
          %s376 = smul.addr %s375, 16
          %s377 = scalar_lea.vmem [#allocation5], %s376
          %379 = vsyncadd %s374, 0
          %s380 = smul.addr %s33, 2
          %s381 = smul.addr %s380, 8
          %s382 = scalar_lea.hbm %s1, %s381
          %s383 = sshll.u32 %s382, 4
          %s384 = int_to_ptr.hbm [resolvable:$true] %s383
          %s385 = sshll.u32 %s377, 4
          %s386 = int_to_ptr.vmem [resolvable:$true] %s385
          %391 = dma.hbm_to_vmem [thread:$0]  %s384, 256, %s386, %s374, 128, 128, 8
        $region40: #{tpu_custom_call.1} parent=31 // pred_fallthru
          _
        // Predicated region
        $region41: #{tpu_custom_call.1} parent=31 // pred_check
          %p392 = pneg %p105
        $region42: #{tpu_custom_call.1} parent=31 // pred_check_branch
          %394 = sbr.rel (%p392) target = $region44
        $region43: #{tpu_custom_call.1} parent=31 // pred_region
          %s395 = sand.u32 %s33, 1
          %s396 = scalar_lea.sflag [#allocation6], %s395
          %s397 = sand.u32 %s95, 1
          %s398 = smul.addr %s397, 16
          %s399 = scalar_lea.vmem [#allocation7], %s398
          %401 = vsyncadd %s396, 0
          %s402 = smul.addr %s33, 2
          %s403 = smul.addr %s402, 8
          %s404 = scalar_lea.hbm %s2, %s403
          %s405 = sshll.u32 %s404, 4
          %s406 = int_to_ptr.hbm [resolvable:$true] %s405
          %s407 = sshll.u32 %s399, 4
          %s408 = int_to_ptr.vmem [resolvable:$true] %s407
          %413 = dma.hbm_to_vmem [thread:$0]  %s406, 256, %s408, %s396, 128, 128, 8
        $region44: #{tpu_custom_call.1} parent=31 // pred_fallthru
          _
        // Predicated region
        $region45: #{tpu_custom_call.1} parent=31 // pred_check
          %p414 = pneg %p131
        $region46: #{tpu_custom_call.1} parent=31 // pred_check_branch
          %416 = sbr.rel (%p414) target = $region48
        $region47: #{tpu_custom_call.1} parent=31 // pred_region
          %s417 = sand.u32 %s33, 1
          %s418 = scalar_lea.sflag [#allocation9], %s417
          %s419 = sand.u32 %s121, 1
          %s420 = smul.addr %s419, 16
          %s421 = scalar_lea.vmem [#allocation8], %s420
          %423 = vsyncadd %s418, 0
          %s424 = smul.addr %s33, 2
          %s425 = smul.addr %s424, 8
          %s426 = scalar_lea.hbm %s3, %s425
          %s427 = sshll.u32 %s426, 4
          %s428 = int_to_ptr.hbm [resolvable:$true] %s427
          %s429 = sshll.u32 %s421, 4
          %s430 = int_to_ptr.vmem [resolvable:$true] %s429
          %435 = dma.hbm_to_vmem [thread:$0]  %s428, 256, %s430, %s418, 128, 128, 8
        $region48: #{tpu_custom_call.1} parent=31 // pred_fallthru
          _
      $region32: #{tpu_custom_call.1} parent=5 // pred_fallthru
        _
      %p436 = scmp.le.s32.totalorder 1, %s33
      %p437 = scmp.lt.s32.totalorder %s33, 3
      %p438 = pnand %p436, %p437
      %p439 = pneg %p438
      // Predicated region
      $region49: #{tpu_custom_call.1} parent=5 // pred_check
        _
      $region50: #{tpu_custom_call.1} parent=5 // pred_check_branch
        %441 = sbr.rel (%p438) target = $region52
      $region51: #{tpu_custom_call.1} parent=5 // pred_region
        %s442 = ssub.s32 %s33, 1
        %s443 = sand.u32 %s46, 1
        %s444 = scalar_lea.sflag [#allocation3], %s443
        %s445 = sand.u32 %s46, 1
        %s446 = smul.addr %s445, 16
        %s447 = scalar_lea.vmem [#allocation2], %s446
        // Predicated region
        $region53: #{tpu_custom_call.1} parent=51 // pred_check
          %p448 = pneg %p59
        $region54: #{tpu_custom_call.1} parent=51 // pred_check_branch
          %450 = sbr.rel (%p448) target = $region56
        $region55: #{tpu_custom_call.1} parent=51 // pred_region
          %452 = dma.done %s444, 256
        $region56: #{tpu_custom_call.1} parent=51 // pred_fallthru
          _
        %s453 = sand.u32 %s38, 1
        %s454 = scalar_lea.sflag [#allocation6], %s453
        %s455 = sand.u32 %s72, 1
        %s456 = smul.addr %s455, 16
        %s457 = scalar_lea.vmem [#allocation5], %s456
        // Predicated region
        $region57: #{tpu_custom_call.1} parent=51 // pred_check
          %p458 = pneg %p85
        $region58: #{tpu_custom_call.1} parent=51 // pred_check_branch
          %460 = sbr.rel (%p458) target = $region60
        $region59: #{tpu_custom_call.1} parent=51 // pred_region
          %462 = dma.done %s454, 256
        $region60: #{tpu_custom_call.1} parent=51 // pred_fallthru
          _
        %s463 = sand.u32 %s38, 1
        %s464 = scalar_lea.sflag [#allocation6], %s463
        %s465 = sand.u32 %s98, 1
        %s466 = smul.addr %s465, 16
        %s467 = scalar_lea.vmem [#allocation7], %s466
        // Predicated region
        $region61: #{tpu_custom_call.1} parent=51 // pred_check
          %p468 = pneg %p111
        $region62: #{tpu_custom_call.1} parent=51 // pred_check_branch
          %470 = sbr.rel (%p468) target = $region64
        $region63: #{tpu_custom_call.1} parent=51 // pred_region
          %472 = dma.done %s464, 256
        $region64: #{tpu_custom_call.1} parent=51 // pred_fallthru
          _
        %s473 = sand.u32 %s38, 1
        %s474 = scalar_lea.sflag [#allocation9], %s473
        %s475 = sand.u32 %s124, 1
        %s476 = smul.addr %s475, 16
        %s477 = scalar_lea.vmem [#allocation8], %s476
        // Predicated region
        $region65: #{tpu_custom_call.1} parent=51 // pred_check
          %p478 = pneg %p137
        $region66: #{tpu_custom_call.1} parent=51 // pred_check_branch
          %480 = sbr.rel (%p478) target = $region68
        $region67: #{tpu_custom_call.1} parent=51 // pred_region
          %482 = dma.done %s474, 256
        $region68: #{tpu_custom_call.1} parent=51 // pred_fallthru
          _
        // Predicated region
        $region69: #{tpu_custom_call.1} parent=51 // pred_check
          %p483 = pneg %p158
        $region70: #{tpu_custom_call.1} parent=51 // pred_check_branch
          %485 = sbr.rel (%p483) target = $region72
        $region71: #{tpu_custom_call.1} parent=51 // pred_region
          %487 = dma.done [#allocation9], 256
        $region72: #{tpu_custom_call.1} parent=51 // pred_fallthru
          _
        // Predicated region
        $region73: #{tpu_custom_call.1} parent=51 // pred_check
          %p488 = pneg %p179
        $region74: #{tpu_custom_call.1} parent=51 // pred_check_branch
          %490 = sbr.rel (%p488) target = $region76
        $region75: #{tpu_custom_call.1} parent=51 // pred_region
          %492 = dma.done [#allocation12], 256
        $region76: #{tpu_custom_call.1} parent=51 // pred_fallthru
          _
        // Predicated region
        $region77: #{tpu_custom_call.1} parent=51 // pred_check
          %p493 = pneg %p200
        $region78: #{tpu_custom_call.1} parent=51 // pred_check_branch
          %495 = sbr.rel (%p493) target = $region80
        $region79: #{tpu_custom_call.1} parent=51 // pred_region
          %497 = dma.done [#allocation12], 2048
        $region80: #{tpu_custom_call.1} parent=51 // pred_fallthru
          _
        // Predicated region
        $region81: #{tpu_custom_call.1} parent=51 // pred_check
          %p498 = pneg %p221
        $region82: #{tpu_custom_call.1} parent=51 // pred_check_branch
          %500 = sbr.rel (%p498) target = $region84
        $region83: #{tpu_custom_call.1} parent=51 // pred_region
          %502 = dma.done [#allocation15], 2048
        $region84: #{tpu_custom_call.1} parent=51 // pred_fallthru
          _
        %s503 = sand.u32 %s46, 1
        %s504 = scalar_lea.sflag [#allocation3], %s503
        %s505 = sand.u32 %s46, 1
        %s506 = smul.addr %s505, 16
        %s507 = scalar_lea.vmem [#allocation2], %s506
        %p508 = pneg %p59
        %p509 = pneg %p56
        %s510 = sand.u32 %s38, 1
        %s511 = scalar_lea.sflag [#allocation6], %s510
        %s512 = sand.u32 %s72, 1
        %s513 = smul.addr %s512, 16
        %s514 = scalar_lea.vmem [#allocation5], %s513
        %p515 = pneg %p85
        %p516 = pneg %p82
        %s517 = sand.u32 %s38, 1
        %s518 = scalar_lea.sflag [#allocation6], %s517
        %s519 = sand.u32 %s98, 1
        %s520 = smul.addr %s519, 16
        %s521 = scalar_lea.vmem [#allocation7], %s520
        %p522 = pneg %p111
        %p523 = pneg %p108
        %s524 = sand.u32 %s38, 1
        %s525 = scalar_lea.sflag [#allocation9], %s524
        %s526 = sand.u32 %s124, 1
        %s527 = smul.addr %s526, 16
        %s528 = scalar_lea.vmem [#allocation8], %s527
        %p529 = pneg %p137
        %p530 = pneg %p134
        %p531 = pneg %p158
        %p532 = pneg %p155
        %p533 = pneg %p179
        %p534 = pneg %p176
        %p535 = pneg %p200
        %p536 = pneg %p197
        %p537 = pneg %p221
        %p538 = pneg %p218
        %p539 = pneg %p247
        %p540 = pneg %p244
        %s541 = sand.u32 %s234, 1
        %s542 = scalar_lea.sflag [#allocation4], %s541
        %s543 = sand.u32 %s234, 1
        %s544 = smul.addr %s543, 16
        %s545 = scalar_lea.vmem [#allocation16], %s544
        %p546 = pneg %p273
        %p547 = pneg %p270
        %s548 = sand.u32 %s260, 1
        %s549 = scalar_lea.sflag [#allocation18], %s548
        %s550 = sand.u32 %s260, 1
        %s551 = smul.addr %s550, 16
        %s552 = scalar_lea.vmem [#allocation17], %s551
        %v553 = vld [vmem:[#allocation11] sm:$0xff]
        %v554 = vld [vmem:[#allocation11 + $0x8] sm:$0xff]
        %v555 = vsub.f32 0.0, %v553
        %v556 = vsub.f32 0.0, %v554
        %v557 = vld [vmem:[#allocation14] sm:$0xff]
        %v558 = vld [vmem:[#allocation14 + $0x8] sm:$0xff]
        %v559 = vld [vmem:[#allocation14 + $0x10] sm:$0xff]
        %v560 = vld [vmem:[#allocation14 + $0x18] sm:$0xff]
        %v561 = vld [vmem:[#allocation14 + $0x20] sm:$0xff]
        %v562 = vld [vmem:[#allocation14 + $0x28] sm:$0xff]
        %v563 = vld [vmem:[#allocation14 + $0x30] sm:$0xff]
        %v564 = vld [vmem:[#allocation14 + $0x38] sm:$0xff]
        %v565 = vld [vmem:[#allocation14 + $0x40] sm:$0xff]
        %v566 = vld [vmem:[#allocation14 + $0x48] sm:$0xff]
        %v567 = vld [vmem:[#allocation14 + $0x50] sm:$0xff]
        %v568 = vld [vmem:[#allocation14 + $0x58] sm:$0xff]
        %v569 = vld [vmem:[#allocation14 + $0x60] sm:$0xff]
        %v570 = vld [vmem:[#allocation14 + $0x68] sm:$0xff]
        %v571 = vld [vmem:[#allocation14 + $0x70] sm:$0xff]
        %v572 = vld [vmem:[#allocation14 + $0x78] sm:$0xff]
        %v573 = vsub.f32 0.0, %v557
        %v574 = vsub.f32 0.0, %v558
        %v575 = vsub.f32 0.0, %v559
        %v576 = vsub.f32 0.0, %v560
        %v577 = vsub.f32 0.0, %v561
        %v578 = vsub.f32 0.0, %v562
        %v579 = vsub.f32 0.0, %v563
        %v580 = vsub.f32 0.0, %v564
        %v581 = vsub.f32 0.0, %v565
        %v582 = vsub.f32 0.0, %v566
        %v583 = vsub.f32 0.0, %v567
        %v584 = vsub.f32 0.0, %v568
        %v585 = vsub.f32 0.0, %v569
        %v586 = vsub.f32 0.0, %v570
        %v587 = vsub.f32 0.0, %v571
        %v588 = vsub.f32 0.0, %v572
        %v589 = vld [vmem:[%s447] sm:$0xff]
        %v590 = vld [vmem:[%s447 + $0x8] sm:$0xff]
        %v591 = vld [vmem:[%s457] sm:$0xff]
        %v592 = vld [vmem:[%s457 + $0x8] sm:$0xff]
        %v593 = vld [vmem:[%s467] sm:$0xff]
        %v594 = vld [vmem:[%s467 + $0x8] sm:$0xff]
        %v595 = vld [vmem:[%s477] sm:$0xff]
        %v596 = vld [vmem:[%s477 + $0x8] sm:$0xff]
        %v597 = vld [vmem:[#allocation10] sm:$0xff]
        %v598 = vld [vmem:[#allocation10 + $0x8] sm:$0xff]
        %v599 = vld [vmem:[#allocation13] sm:$0xff]
        %v600 = vld [vmem:[#allocation13 + $0x8] sm:$0xff]
        %v601 = vld [vmem:[#allocation13 + $0x10] sm:$0xff]
        %v602 = vld [vmem:[#allocation13 + $0x18] sm:$0xff]
        %v603 = vld [vmem:[#allocation13 + $0x20] sm:$0xff]
        %v604 = vld [vmem:[#allocation13 + $0x28] sm:$0xff]
        %v605 = vld [vmem:[#allocation13 + $0x30] sm:$0xff]
        %v606 = vld [vmem:[#allocation13 + $0x38] sm:$0xff]
        %v607 = vld [vmem:[#allocation13 + $0x40] sm:$0xff]
        %v608 = vld [vmem:[#allocation13 + $0x48] sm:$0xff]
        %v609 = vld [vmem:[#allocation13 + $0x50] sm:$0xff]
        %v610 = vld [vmem:[#allocation13 + $0x58] sm:$0xff]
        %v611 = vld [vmem:[#allocation13 + $0x60] sm:$0xff]
        %v612 = vld [vmem:[#allocation13 + $0x68] sm:$0xff]
        %v613 = vld [vmem:[#allocation13 + $0x70] sm:$0xff]
        %v614 = vld [vmem:[#allocation13 + $0x78] sm:$0xff]
        %615 = vmatpush.msra.mxu0 %v614
        %616 = vmatpush.msra.mxu0 %v613
        %617 = vmatpush.msra.mxu0 %v612
        %618 = vmatpush.msra.mxu0 %v611
        %619 = vmatpush.msra.mxu0 %v610
        %620 = vmatpush.msra.mxu0 %v609
        %621 = vmatpush.msra.mxu0 %v608
        %622 = vmatpush.msra.mxu0 %v607
        %623 = vmatpush.msra.mxu0 %v606
        %624 = vmatpush.msra.mxu0 %v605
        %625 = vmatpush.msra.mxu0 %v604
        %626 = vmatpush.msra.mxu0 %v603
        %627 = vmatpush.msra.mxu0 %v602
        %628 = vmatpush.msra.mxu0 %v601
        %629 = vmatpush.msra.mxu0 %v600
        %630 = vmatpush.msra.mxu0 %v599
        %631 = vmatmul.f32.gmra.mxu0 %v589
        %v632 = vpop.f32.mrf.mxu0
        %v633 = vadd.f32 0.0, %v632
        %634 = vmatmul.f32.gmra.mxu0 %v590
        %v635 = vpop.f32.mrf.mxu0
        %v636 = vadd.f32 0.0, %v635
        %637 = vdwg.mxu0
        %638 = vmatpush.msra.mxu0 %v588
        %639 = vmatpush.msra.mxu0 %v587
        %640 = vmatpush.msra.mxu0 %v586
        %641 = vmatpush.msra.mxu0 %v585
        %642 = vmatpush.msra.mxu0 %v584
        %643 = vmatpush.msra.mxu0 %v583
        %644 = vmatpush.msra.mxu0 %v582
        %645 = vmatpush.msra.mxu0 %v581
        %646 = vmatpush.msra.mxu0 %v580
        %647 = vmatpush.msra.mxu0 %v579
        %648 = vmatpush.msra.mxu0 %v578
        %649 = vmatpush.msra.mxu0 %v577
        %650 = vmatpush.msra.mxu0 %v576
        %651 = vmatpush.msra.mxu0 %v575
        %652 = vmatpush.msra.mxu0 %v574
        %653 = vmatpush.msra.mxu0 %v573
        %654 = vmatmul.f32.gmra.mxu0 %v591
        %v655 = vpop.f32.mrf.mxu0
        %v656 = vadd.f32 0.0, %v655
        %657 = vmatmul.f32.gmra.mxu0 %v592
        %v658 = vpop.f32.mrf.mxu0
        %v659 = vadd.f32 0.0, %v658
        %660 = vdwg.mxu0
        %v661 = vadd.f32 %v589, %v591
        %v662 = vadd.f32 %v590, %v592
        %v663 = vadd.f32 %v599, %v573
        %v664 = vadd.f32 %v600, %v574
        %v665 = vadd.f32 %v601, %v575
        %v666 = vadd.f32 %v602, %v576
        %v667 = vadd.f32 %v603, %v577
        %v668 = vadd.f32 %v604, %v578
        %v669 = vadd.f32 %v605, %v579
        %v670 = vadd.f32 %v606, %v580
        %v671 = vadd.f32 %v607, %v581
        %v672 = vadd.f32 %v608, %v582
        %v673 = vadd.f32 %v609, %v583
        %v674 = vadd.f32 %v610, %v584
        %v675 = vadd.f32 %v611, %v585
        %v676 = vadd.f32 %v612, %v586
        %v677 = vadd.f32 %v613, %v587
        %v678 = vadd.f32 %v614, %v588
        %679 = vmatpush.msra.mxu0 %v678
        %680 = vmatpush.msra.mxu0 %v677
        %681 = vmatpush.msra.mxu0 %v676
        %682 = vmatpush.msra.mxu0 %v675
        %683 = vmatpush.msra.mxu0 %v674
        %684 = vmatpush.msra.mxu0 %v673
        %685 = vmatpush.msra.mxu0 %v672
        %686 = vmatpush.msra.mxu0 %v671
        %687 = vmatpush.msra.mxu0 %v670
        %688 = vmatpush.msra.mxu0 %v669
        %689 = vmatpush.msra.mxu0 %v668
        %690 = vmatpush.msra.mxu0 %v667
        %691 = vmatpush.msra.mxu0 %v666
        %692 = vmatpush.msra.mxu0 %v665
        %693 = vmatpush.msra.mxu0 %v664
        %694 = vmatpush.msra.mxu0 %v663
        %695 = vmatmul.f32.gmra.mxu0 %v661
        %v696 = vpop.f32.mrf.mxu0
        %v697 = vadd.f32 0.0, %v696
        %698 = vmatmul.f32.gmra.mxu0 %v662
        %v699 = vpop.f32.mrf.mxu0
        %v700 = vadd.f32 0.0, %v699
        %701 = vdwg.mxu0
        %v702 = vsub.f32 %v633, %v656
        %v703 = vsub.f32 %v636, %v659
        %v704 = vsub.f32 %v697, %v633
        %v705 = vsub.f32 %v700, %v636
        %v706 = vsub.f32 %v704, %v656
        %v707 = vsub.f32 %v705, %v659
        %vm708 = vcmask 130048
        %v710 = vsel %vm708, %v597, 0
        %v713 = vsel %vm708, %v598, 0
        %715 = vmatpush.msra.mxu0 0.0
        %716 = vmatpush.msra.mxu0 0.0
        %717 = vmatpush.msra.mxu0 0.0
        %718 = vmatpush.msra.mxu0 0.0
        %719 = vmatpush.msra.mxu0 0.0
        %720 = vmatpush.msra.mxu0 0.0
        %721 = vmatpush.msra.mxu0 0.0
        %722 = vmatpush.msra.mxu0 0.0
        %723 = vmatpush.msra.mxu0 0.0
        %724 = vmatpush.msra.mxu0 0.0
        %725 = vmatpush.msra.mxu0 0.0
        %726 = vmatpush.msra.mxu0 0.0
        %727 = vmatpush.msra.mxu0 0.0
        %728 = vmatpush.msra.mxu0 0.0
        %729 = vmatpush.msra.mxu0 %v703
        %730 = vmatpush.msra.mxu0 %v702
        %731 = vmatmul.f32.gmra.mxu0 %v710
        %v732 = vpop.f32.mrf.mxu0
        %v733 = vadd.f32 0.0, %v732
        %734 = vmatmul.f32.gmra.mxu0 %v713
        %v735 = vpop.f32.mrf.mxu0
        %v736 = vadd.f32 0.0, %v735
        %737 = vdwg.mxu0
        %v739 = vsel %vm708, %v555, 0
        %v742 = vsel %vm708, %v556, 0
        %744 = vmatpush.msra.mxu0 0.0
        %745 = vmatpush.msra.mxu0 0.0
        %746 = vmatpush.msra.mxu0 0.0
        %747 = vmatpush.msra.mxu0 0.0
        %748 = vmatpush.msra.mxu0 0.0
        %749 = vmatpush.msra.mxu0 0.0
        %750 = vmatpush.msra.mxu0 0.0
        %751 = vmatpush.msra.mxu0 0.0
        %752 = vmatpush.msra.mxu0 0.0
        %753 = vmatpush.msra.mxu0 0.0
        %754 = vmatpush.msra.mxu0 0.0
        %755 = vmatpush.msra.mxu0 0.0
        %756 = vmatpush.msra.mxu0 0.0
        %757 = vmatpush.msra.mxu0 0.0
        %758 = vmatpush.msra.mxu0 %v707
        %759 = vmatpush.msra.mxu0 %v706
        %760 = vmatmul.f32.gmra.mxu0 %v739
        %v761 = vpop.f32.mrf.mxu0
        %v762 = vadd.f32 0.0, %v761
        %763 = vmatmul.f32.gmra.mxu0 %v742
        %v764 = vpop.f32.mrf.mxu0
        %v765 = vadd.f32 0.0, %v764
        %766 = vdwg.mxu0
        %v767 = vadd.f32 %v597, %v555
        %v768 = vadd.f32 %v598, %v556
        %v769 = vadd.f32 %v702, %v706
        %v770 = vadd.f32 %v703, %v707
        %v772 = vsel %vm708, %v767, 0
        %v775 = vsel %vm708, %v768, 0
        %777 = vmatpush.msra.mxu0 0.0
        %778 = vmatpush.msra.mxu0 0.0
        %779 = vmatpush.msra.mxu0 0.0
        %780 = vmatpush.msra.mxu0 0.0
        %781 = vmatpush.msra.mxu0 0.0
        %782 = vmatpush.msra.mxu0 0.0
        %783 = vmatpush.msra.mxu0 0.0
        %784 = vmatpush.msra.mxu0 0.0
        %785 = vmatpush.msra.mxu0 0.0
        %786 = vmatpush.msra.mxu0 0.0
        %787 = vmatpush.msra.mxu0 0.0
        %788 = vmatpush.msra.mxu0 0.0
        %789 = vmatpush.msra.mxu0 0.0
        %790 = vmatpush.msra.mxu0 0.0
        %791 = vmatpush.msra.mxu0 %v770
        %792 = vmatpush.msra.mxu0 %v769
        %793 = vmatmul.f32.gmra.mxu0 %v772
        %v794 = vpop.f32.mrf.mxu0
        %v795 = vadd.f32 0.0, %v794
        %796 = vmatmul.f32.gmra.mxu0 %v775
        %v797 = vpop.f32.mrf.mxu0
        %v798 = vadd.f32 0.0, %v797
        %799 = vdwg.mxu0
        %v800 = vsub.f32 %v733, %v762
        %v801 = vsub.f32 %v736, %v765
        %v802 = vsub.f32 %v795, %v733
        %v803 = vsub.f32 %v798, %v736
        %v804 = vsub.f32 %v802, %v762
        %v805 = vsub.f32 %v803, %v765
        %v806 = vmul.f32 %v593, %v800
        %v807 = vmul.f32 %v594, %v801
        %v808 = vmul.f32 %v595, %v804
        %v809 = vmul.f32 %v596, %v805
        %v810 = vadd.f32 %v806, %v808
        %v811 = vadd.f32 %v807, %v809
        %v812 = vmul.f32 %v593, %v804
        %v813 = vmul.f32 %v594, %v805
        %v814 = vmul.f32 %v595, %v800
        %v815 = vmul.f32 %v596, %v801
        %v816 = vsub.f32 %v812, %v814
        %v817 = vsub.f32 %v813, %v815
        %820 = vrot.lane.b32.xlu0 %v810, 96
        %v821 = vpop.permute.xlu0 %820
        %822 = vrot.lane.b32.xlu0 %v811, 96
        %v823 = vpop.permute.xlu0 %822
        %v826 = vadd.f32 %v810, %v821
        %v827 = vadd.f32 %v811, %v823
        %830 = vrot.lane.b32.xlu0 %v816, 96
        %v831 = vpop.permute.xlu0 %830
        %832 = vrot.lane.b32.xlu0 %v817, 96
        %v833 = vpop.permute.xlu0 %832
        %v836 = vadd.f32 %v816, %v831
        %v837 = vadd.f32 %v817, %v833
        %838 = vrot.lane.b32.xlu0 %v810, 64
        %v839 = vpop.permute.xlu0 %838
        %840 = vrot.lane.b32.xlu0 %v811, 64
        %v841 = vpop.permute.xlu0 %840
        %v844 = vadd.f32 %v826, %v839
        %v845 = vadd.f32 %v827, %v841
        %846 = vrot.lane.b32.xlu0 %v816, 64
        %v847 = vpop.permute.xlu0 %846
        %848 = vrot.lane.b32.xlu0 %v817, 64
        %v849 = vpop.permute.xlu0 %848
        %v852 = vadd.f32 %v836, %v847
        %v853 = vadd.f32 %v837, %v849
        %854 = vrot.lane.b32.xlu0 %v810, 32
        %v855 = vpop.permute.xlu0 %854
        %856 = vrot.lane.b32.xlu0 %v811, 32
        %v857 = vpop.permute.xlu0 %856
        %v860 = vadd.f32 %v844, %v855
        %v861 = vadd.f32 %v845, %v857
        %862 = vrot.lane.b32.xlu0 %v816, 32
        %v863 = vpop.permute.xlu0 %862
        %864 = vrot.lane.b32.xlu0 %v817, 32
        %v865 = vpop.permute.xlu0 %864
        %v868 = vadd.f32 %v852, %v863
        %v869 = vadd.f32 %v853, %v865
        %vm870 = vcmask 261120
        %871 = vst.msk [vmem:[%s545] sm:$0xff] %vm870, %v860
        %872 = vst.msk [vmem:[%s545 + $0x8] sm:$0xff] %vm870, %v861
        %873 = vst.msk [vmem:[%s552] sm:$0xff] %vm870, %v868
        %874 = vst.msk [vmem:[%s552 + $0x8] sm:$0xff] %vm870, %v869
        %s875 = sand.u32 %s234, 1
        %s876 = scalar_lea.sflag [#allocation4], %s875
        %s877 = sand.u32 %s234, 1
        %s878 = smul.addr %s877, 16
        %s879 = scalar_lea.vmem [#allocation16], %s878
        %s880 = sand.u32 %s260, 1
        %s881 = scalar_lea.sflag [#allocation18], %s880
        %s882 = sand.u32 %s260, 1
        %s883 = smul.addr %s882, 16
        %s884 = scalar_lea.vmem [#allocation17], %s883
        // Predicated region
        $region85: #{tpu_custom_call.1} parent=51 // pred_check
          %p885 = pneg %p244
        $region86: #{tpu_custom_call.1} parent=51 // pred_check_branch
          %887 = sbr.rel (%p885) target = $region88
        $region87: #{tpu_custom_call.1} parent=51 // pred_region
          %889 = vsyncadd %s876, 0
          %s890 = smul.addr %s38, 2
          %s891 = smul.addr %s890, 8
          %s892 = scalar_lea.hbm %s8, %s891
          %s893 = sshll.u32 %s879, 4
          %s894 = int_to_ptr.vmem [resolvable:$true] %s893
          %s895 = sshll.u32 %s892, 4
          %s896 = int_to_ptr.hbm [resolvable:$true] %s895
          %901 = dma.vmem_to_hbm [thread:$0]  %s894, 256, %s896, %s876, 128, 128, 8
        $region88: #{tpu_custom_call.1} parent=51 // pred_fallthru
          _
        // Predicated region
        $region89: #{tpu_custom_call.1} parent=51 // pred_check
          %p902 = pneg %p270
        $region90: #{tpu_custom_call.1} parent=51 // pred_check_branch
          %904 = sbr.rel (%p902) target = $region92
        $region91: #{tpu_custom_call.1} parent=51 // pred_region
          %906 = vsyncadd %s881, 0
          %s907 = smul.addr %s38, 2
          %s908 = smul.addr %s907, 8
          %s909 = scalar_lea.hbm %s9, %s908
          %s910 = sshll.u32 %s884, 4
          %s911 = int_to_ptr.vmem [resolvable:$true] %s910
          %s912 = sshll.u32 %s909, 4
          %s913 = int_to_ptr.hbm [resolvable:$true] %s912
          %918 = dma.vmem_to_hbm [thread:$0]  %s911, 256, %s913, %s881, 128, 128, 8
        $region92: #{tpu_custom_call.1} parent=51 // pred_fallthru
          _
      $region52: #{tpu_custom_call.1} parent=5 // pred_fallthru
        _
      %p919 = scmp.le.s32.totalorder 2, %s33
      // Predicated region
      $region93: #{tpu_custom_call.1} parent=5 // pred_check
        %p920 = pneg %p919
      $region94: #{tpu_custom_call.1} parent=5 // pred_check_branch
        %922 = sbr.rel (%p920) target = $region96
      $region95: #{tpu_custom_call.1} parent=5 // pred_region
        %s923 = ssub.s32 %s33, 2
        // Predicated region
        $region97: #{tpu_custom_call.1} parent=95 // pred_check
          %p924 = pneg %p250
        $region98: #{tpu_custom_call.1} parent=95 // pred_check_branch
          %926 = sbr.rel (%p924) target = $region100
        $region99: #{tpu_custom_call.1} parent=95 // pred_region
          %s927 = sand.u32 %s235, 1
          %s928 = scalar_lea.sflag [#allocation4], %s927
          %s929 = sand.u32 %s235, 1
          %s930 = smul.addr %s929, 16
          %s931 = scalar_lea.vmem [#allocation16], %s930
          %933 = dma.done %s928, 256
        $region100: #{tpu_custom_call.1} parent=95 // pred_fallthru
          _
        // Predicated region
        $region101: #{tpu_custom_call.1} parent=95 // pred_check
          %p934 = pneg %p276
        $region102: #{tpu_custom_call.1} parent=95 // pred_check_branch
          %936 = sbr.rel (%p934) target = $region104
        $region103: #{tpu_custom_call.1} parent=95 // pred_region
          %s937 = sand.u32 %s261, 1
          %s938 = scalar_lea.sflag [#allocation18], %s937
          %s939 = sand.u32 %s261, 1
          %s940 = smul.addr %s939, 16
          %s941 = scalar_lea.vmem [#allocation17], %s940
          %943 = dma.done %s938, 256
        $region104: #{tpu_custom_call.1} parent=95 // pred_fallthru
          _
      $region96: #{tpu_custom_call.1} parent=5 // pred_fallthru
        _
    $region6: #{tpu_custom_call.1} parent=1 // loop_footer
      %s37 = sadd.s32 1, %s33
    $region7: #{tpu_custom_call.1} parent=1 // loop_footer_branch
      %32 = sbr.rel target = $region3
    $region8: #{tpu_custom_call.1} parent=1 // loop_exit
      _
    %944 = vsyncpa [#allocation3], 1
    %s945 = scalar_lea.sflag [#allocation3], 1
    %946 = vsyncpa %s945, 1
    %947 = vsyncpa [#allocation6], 1
    %s948 = scalar_lea.sflag [#allocation6], 1
    %949 = vsyncpa %s948, 1
    %950 = vsyncpa [#allocation9], 1
    %s951 = scalar_lea.sflag [#allocation9], 1
    %952 = vsyncpa %s951, 1
    %953 = vsyncpa [#allocation12], 1
    %954 = vsyncpa [#allocation15], 1
    %955 = vsyncpa [#allocation4], 1
    %s956 = scalar_lea.sflag [#allocation4], 1
    %957 = vsyncpa %s956, 1
    %958 = vsyncpa [#allocation18], 1
    %s959 = scalar_lea.sflag [#allocation18], 1
    %960 = vsyncpa %s959, 1

</llo_original>
